<compile_context>
chip_gen: v6e
topology: v6e:2x2x1
jax: 0.10.0
libtpu: 0.0.40
codegen_flags: <defaults>
</compile_context>

<pallas_src>
import jax
import jax.numpy as jnp
from jax.experimental import pallas as pl
from jax.experimental.pallas import tpu as pltpu


def _uda_ce_kernel(temperature, threshold, tn, n_inner, n_rows, n_rows_padded):
    """Returns a kernel closure over the static scalars / tiling constants."""
    inv_temp = 1.0 / float(temperature)
    use_thresh = float(threshold) > 0.0
    inv_threshold = (1.0 / float(threshold)) if use_thresh else 0.0
    needs_valid_mask = n_rows_padded != n_rows

    def kernel(ls_ref, lw_ref, loss_ref, mask_ref):
        c = pl.program_id(0)          # core-slot axis
        i = pl.program_id(1)          # inner (reduction) axis

        @pl.when(i == 0)
        def _():
            loss_ref[...] = jnp.zeros_like(loss_ref)
            mask_ref[...] = jnp.zeros_like(mask_ref)

        ls = ls_ref[...].astype(jnp.float32)            # (tn, C) strong-aug logits
        lw = lw_ref[...].astype(jnp.float32)            # (tn, C) weak-aug logits

        # log_softmax(logits_s) pieces (max-shifted, f32).
        ls_max = jnp.max(ls, axis=-1, keepdims=True)
        ls_shift = ls - ls_max
        lse = jnp.log(jnp.sum(jnp.exp(ls_shift), axis=-1, keepdims=True))   # (tn, 1)

        # softmax(logits_w / T): only the unnormalized exps + denom are needed.
        lwt = lw * inv_temp
        lw_max = jnp.max(lwt, axis=-1, keepdims=True)
        e = jnp.exp(lwt - lw_max)                                            # (tn, C)
        denom = jnp.sum(e, axis=-1, keepdims=True)                           # (tn, 1)

        # max(softmax(lw/T)) == max(e)/denom == 1/denom exactly, so the
        # confidence test is `denom < 1/threshold`: no cross-lane max and no
        # reciprocal in the mask path.
        if use_thresh:
            gate = (denom < inv_threshold).astype(jnp.float32)               # (tn, 1)
        else:
            gate = jnp.ones_like(denom)

        if needs_valid_mask:
            # Zero out the rows added by padding (ragged N).
            row0 = (c * n_inner + i) * tn
            rows = row0 + jax.lax.broadcasted_iota(jnp.int32, (tn, 1), 0)
            gate = gate * (rows < n_rows).astype(jnp.float32)

        # sum(weight * log_prob) = sum(e * ls_shift)/denom - lse  (sum(weight)==1);
        # `weight` is never materialized as a (tn, C) array.
        dot = jnp.sum(e * ls_shift, axis=-1, keepdims=True)                  # (tn, 1)
        row_loss = (lse - dot * pl.reciprocal(denom)) * gate                 # (tn, 1)

        # Reduce to per-tile scalars before touching the resident (1,1,1)
        # accumulators: one lane-padded vreg store per output per step.
        loss_ref[...] += jnp.sum(row_loss, axis=0, keepdims=True)[None]
        mask_ref[...] += jnp.sum(gate, axis=0, keepdims=True)[None]

    return kernel


def _pick_row_tile(n_rows, n_classes, itemsize):
    """Largest row tile that fits a conservative VMEM budget."""
    sublane = 8 if itemsize >= 4 else (16 if itemsize == 2 else 32)
    # Budget covers 2 inputs x 2 pipeline buffers at the input dtype plus an
    # allowance of ~6 (tn, C) f32 compute intermediates; keeps the total well
    # under the 32 MiB vmem limit we request (and v7x's 64 MiB physical VMEM).
    budget = 12 * 1024 * 1024
    per_row = 4 * n_classes * itemsize + 6 * n_classes * 4
    tn_max = max(sublane, min(budget // per_row, 2048))
    tn_max = max(sublane, (tn_max // sublane) * sublane)
    # TODO(synk): for vocab-sized C (>=32K) add an inner grid axis over C with
    # online LSE/denom carries so the row tile can stay large.
    if n_rows <= tn_max:
        return pl.cdiv(n_rows, sublane) * sublane       # one (possibly padded) tile
    # Prefer an exact divisor near the max tile so no row padding is needed.
    tn = tn_max
    while tn >= max(sublane, tn_max // 2) and n_rows % tn != 0:
        tn -= sublane
    if tn >= sublane and n_rows % tn == 0:
        return tn
    return tn_max                                        # wrapper pads rows


def uda_cross_entropy(logits_s, logits_w, *, temperature, threshold,
                      reduction="mean", tn=None):
    """Pallas implementation of UDACrossEntropy.forward.

    Returns (loss, mu_mask) where mu_mask mirrors the module's self.μmask
    (as a device scalar instead of a host .item()).
    """
    N, C = logits_s.shape
    assert logits_w.shape == (N, C)
    itemsize = jnp.dtype(logits_s.dtype).itemsize
    sublane = 8 if itemsize >= 4 else (16 if itemsize == 2 else 32)

    if tn is None:
        tn = _pick_row_tile(N, C, itemsize)
    tn = max(sublane, ((int(tn) + sublane - 1) // sublane) * sublane)

    n_pad = pl.cdiv(N, tn) * tn
    if n_pad != N:
        pad = ((0, n_pad - N), (0, 0))
        logits_s = jnp.pad(logits_s, pad)
        logits_w = jnp.pad(logits_w, pad)

    num_tiles = n_pad // tn
    # Leading "parallel" axis: v7x's two TensorCores may each reduce half of
    # the row tiles into their own partial slot; serial on v5e/v6e.
    ncores = 2 if (num_tiles >= 2 and num_tiles % 2 == 0) else 1
    n_inner = num_tiles // ncores

    kernel = _uda_ce_kernel(temperature, threshold, tn, n_inner, N, n_pad)
    in_map = lambda c, i: (c * n_inner + i, 0)
    out_map = lambda c, i: (c, 0, 0)

    loss_parts, mask_parts = pl.pallas_call(
        kernel,
        out_shape=(
            jax.ShapeDtypeStruct((ncores, 1, 1), jnp.float32),
            jax.ShapeDtypeStruct((ncores, 1, 1), jnp.float32),
        ),
        grid_spec=pltpu.PrefetchScalarGridSpec(
            num_scalar_prefetch=0,
            grid=(ncores, n_inner),
            in_specs=[
                pl.BlockSpec((tn, C), in_map),
                pl.BlockSpec((tn, C), in_map),
            ],
            out_specs=(
                pl.BlockSpec((1, 1, 1), out_map),
                pl.BlockSpec((1, 1, 1), out_map),
            ),
        ),
        compiler_params=pltpu.CompilerParams(
            dimension_semantics=("parallel", "arbitrary"),
            vmem_limit_bytes=32 * 1024 * 1024),
    )(logits_s, logits_w)

    loss_sum = jnp.sum(loss_parts)
    mask_sum = jnp.sum(mask_parts)
    mu_mask = mask_sum / N

    if reduction == "mean":
        loss = loss_sum / N
    elif reduction == "sum":
        loss = loss_sum
    else:
        # TODO(synk): 'none' reduction would need per-row loss outputs written
        # each grid step; only 'mean'/'sum' are wired through the accumulators.
        raise NotImplementedError("reduction must be 'mean' or 'sum'")
    return loss, mu_mask


def _reference(logits_s, logits_w, temperature, threshold, reduction="mean"):
    log_prob = jax.nn.log_softmax(logits_s.astype(jnp.float32), axis=-1)
    weight = jax.nn.softmax(logits_w.astype(jnp.float32) / temperature, axis=-1)
    masks = (jnp.max(weight, axis=-1) > threshold).astype(jnp.float32)
    loss = -jnp.sum(weight * log_prob, axis=-1) * masks
    mu = jnp.mean(masks)
    if reduction == "mean":
        return jnp.mean(loss), mu
    return jnp.sum(loss), mu


if __name__ == "__main__":
    key = jax.random.PRNGKey(0)
    k1, k2, k3, k4, k5, k6 = jax.random.split(key, 6)

    temperature = 0.4
    threshold = 0.6

    # Case 1: small f32, single tile, single core slot, default tn.
    N1, C1 = 16, 128
    ls1 = jax.random.normal(k1, (N1, C1), dtype=jnp.float32) * 2.0
    lw1 = jax.random.normal(k2, (N1, C1), dtype=jnp.float32) * 3.0
    loss1, mu1 = uda_cross_entropy(
        ls1, lw1, temperature=temperature, threshold=threshold, reduction="mean")
    loss1 = jax.block_until_ready(loss1)
    mu1 = jax.block_until_ready(mu1)
    ref_loss1, ref_mu1 = _reference(ls1, lw1, temperature, threshold)
    assert jnp.allclose(loss1, ref_loss1, rtol=1e-5, atol=1e-5), (loss1, ref_loss1)
    assert jnp.allclose(mu1, ref_mu1, rtol=1e-6, atol=1e-6), (mu1, ref_mu1)

    # Case 2: bf16 inputs + ragged N (padding + valid-mask path) + dual slot.
    N2, C2 = 50, 256
    ls2 = (jax.random.normal(k3, (N2, C2), dtype=jnp.float32) * 2.0).astype(jnp.bfloat16)
    lw2 = (jax.random.normal(k4, (N2, C2), dtype=jnp.float32) * 3.0).astype(jnp.bfloat16)
    loss2, mu2 = uda_cross_entropy(
        ls2, lw2, temperature=temperature, threshold=threshold,
        reduction="mean", tn=16)
    loss2 = jax.block_until_ready(loss2)
    mu2 = jax.block_until_ready(mu2)
    ref_loss2, ref_mu2 = _reference(ls2, lw2, temperature, threshold)
    assert jnp.allclose(loss2, ref_loss2, rtol=1e-5, atol=1e-4), (loss2, ref_loss2)
    assert jnp.allclose(mu2, ref_mu2, rtol=1e-6, atol=1e-6), (mu2, ref_mu2)

    # Case 3: multi-tile f32 + dual-core-slot path, 'sum' reduction.
    N3, C3 = 64, 128
    ls3 = jax.random.normal(k5, (N3, C3), dtype=jnp.float32) * 2.0
    lw3 = jax.random.normal(k6, (N3, C3), dtype=jnp.float32) * 3.0
    loss3, mu3 = uda_cross_entropy(
        ls3, lw3, temperature=temperature, threshold=threshold,
        reduction="sum", tn=8)
    loss3 = jax.block_until_ready(loss3)
    mu3 = jax.block_until_ready(mu3)
    ref_loss3, ref_mu3 = _reference(ls3, lw3, temperature, threshold, "sum")
    assert jnp.allclose(loss3, ref_loss3, rtol=1e-5, atol=1e-3), (loss3, ref_loss3)
    assert jnp.allclose(mu3, ref_mu3, rtol=1e-6, atol=1e-6), (mu3, ref_mu3)

    print("KERNEL_OK")
</pallas_src>

<mosaic_0001>
module attributes {stable_mosaic.version = 11 : i64} {
  func.func @kernel(%arg0: i32, %arg1: i32, %arg2: memref<16x128xf32, #tpu.memory_space<vmem>>, %arg3: memref<16x128xf32, #tpu.memory_space<vmem>>, %arg4: memref<1x1x1xf32, #tpu.memory_space<vmem>>, %arg5: memref<1x1x1xf32, #tpu.memory_space<vmem>>) attributes {dimension_semantics = [#tpu.dimension_semantics<parallel>, #tpu.dimension_semantics<arbitrary>], iteration_bounds = array<i64: 1, 1>, scalar_prefetch = 0 : i64, scratch_operands = 0 : i64, tpu.core_type = #tpu.core_type<tc>, window_params = [{transform_indices = @transform_0, window_bounds = array<i64: 16, 128>}, {transform_indices = @transform_1, window_bounds = array<i64: 16, 128>}, {transform_indices = @transform_2, window_bounds = array<i64: 1, 1, 1>}, {transform_indices = @transform_3, window_bounds = array<i64: 1, 1, 1>}]} {
    %c0_i32 = arith.constant 0 : i32
    %0 = arith.cmpi eq, %arg1, %c0_i32 : i32
    %1 = arith.extui %0 : i1 to i32
    %c0_i32_0 = arith.constant 0 : i32
    %2 = arith.cmpi ne, %1, %c0_i32_0 : i32
    scf.if %2 {
      %cst_24 = arith.constant 0.000000e+00 : f32
      %45 = vector.broadcast %cst_24 : f32 to vector<1x1x1xf32>
      %c0_25 = arith.constant 0 : index
      %c0_26 = arith.constant 0 : index
      %c0_27 = arith.constant 0 : index
      %46 = vector.load %arg4[%c0_25, %c0_26, %c0_27] : memref<1x1x1xf32, #tpu.memory_space<vmem>>, vector<1x1x1xf32>
      tpu.vector_store %arg4[%c0_25, %c0_26, %c0_27], %45 {strides = array<i32>} : memref<1x1x1xf32, #tpu.memory_space<vmem>>, vector<1x1x1xf32>,
      %cst_28 = arith.constant 0.000000e+00 : f32
      %47 = vector.broadcast %cst_28 : f32 to vector<1x1x1xf32>
      %c0_29 = arith.constant 0 : index
      %c0_30 = arith.constant 0 : index
      %c0_31 = arith.constant 0 : index
      %48 = vector.load %arg5[%c0_29, %c0_30, %c0_31] : memref<1x1x1xf32, #tpu.memory_space<vmem>>, vector<1x1x1xf32>
      tpu.vector_store %arg5[%c0_29, %c0_30, %c0_31], %47 {strides = array<i32>} : memref<1x1x1xf32, #tpu.memory_space<vmem>>, vector<1x1x1xf32>,
    } else {
    }
    %c0 = arith.constant 0 : index
    %c0_1 = arith.constant 0 : index
    %3 = vector.load %arg2[%c0, %c0_1] : memref<16x128xf32, #tpu.memory_space<vmem>>, vector<16x128xf32>
    %c0_2 = arith.constant 0 : index
    %c0_3 = arith.constant 0 : index
    %4 = vector.load %arg3[%c0_2, %c0_3] : memref<16x128xf32, #tpu.memory_space<vmem>>, vector<16x128xf32>
    %cst = arith.constant dense<0xFF800000> : vector<16xf32>
    %5 = vector.multi_reduction <maximumf>, %3, %cst [1] : vector<16x128xf32> to vector<16xf32>
    %6 = vector.shape_cast %5 : vector<16xf32> to vector<16x1xf32>
    %7 = vector.broadcast %6 : vector<16x1xf32> to vector<16x128xf32>
    %8 = arith.subf %3, %7 : vector<16x128xf32>
    %9 = math.exp %8 : vector<16x128xf32>
    %cst_4 = arith.constant dense<0.000000e+00> : vector<16xf32>
    %10 = vector.multi_reduction <add>, %9, %cst_4 [1] : vector<16x128xf32> to vector<16xf32>
    %11 = vector.shape_cast %10 : vector<16xf32> to vector<16x1xf32>
    %12 = math.log %11 : vector<16x1xf32>
    %cst_5 = arith.constant 2.500000e+00 : f32
    %13 = vector.broadcast %cst_5 : f32 to vector<16x128xf32>
    %14 = arith.mulf %4, %13 : vector<16x128xf32>
    %cst_6 = arith.constant dense<0xFF800000> : vector<16xf32>
    %15 = vector.multi_reduction <maximumf>, %14, %cst_6 [1] : vector<16x128xf32> to vector<16xf32>
    %16 = vector.shape_cast %15 : vector<16xf32> to vector<16x1xf32>
    %17 = vector.broadcast %16 : vector<16x1xf32> to vector<16x128xf32>
    %18 = arith.subf %14, %17 : vector<16x128xf32>
    %19 = math.exp %18 : vector<16x128xf32>
    %cst_7 = arith.constant dense<0.000000e+00> : vector<16xf32>
    %20 = vector.multi_reduction <add>, %19, %cst_7 [1] : vector<16x128xf32> to vector<16xf32>
    %21 = vector.shape_cast %20 : vector<16xf32> to vector<16x1xf32>
    %cst_8 = arith.constant 1.66666663 : f32
    %22 = vector.broadcast %cst_8 : f32 to vector<16x1xf32>
    %23 = arith.cmpf olt, %21, %22 : vector<16x1xf32>
    %24 = arith.extui %23 : vector<16x1xi1> to vector<16x1xi32>
    %25 = arith.sitofp %24 : vector<16x1xi32> to vector<16x1xf32>
    %26 = arith.mulf %19, %8 : vector<16x128xf32>
    %cst_9 = arith.constant dense<0.000000e+00> : vector<16xf32>
    %27 = vector.multi_reduction <add>, %26, %cst_9 [1] : vector<16x128xf32> to vector<16xf32>
    %28 = vector.shape_cast %27 : vector<16xf32> to vector<16x1xf32>
    %29 = tpu.reciprocal %21 : vector<16x1xf32> -> vector<16x1xf32>
    %30 = arith.mulf %28, %29 : vector<16x1xf32>
    %31 = arith.subf %12, %30 : vector<16x1xf32>
    %32 = arith.mulf %31, %25 : vector<16x1xf32>
    %c0_10 = arith.constant 0 : index
    %c0_11 = arith.constant 0 : index
    %c0_12 = arith.constant 0 : index
    %33 = vector.load %arg4[%c0_10, %c0_11, %c0_12] : memref<1x1x1xf32, #tpu.memory_space<vmem>>, vector<1x1x1xf32>
    %cst_13 = arith.constant dense<0.000000e+00> : vector<1xf32>
    %34 = vector.multi_reduction <add>, %32, %cst_13 [0] : vector<16x1xf32> to vector<1xf32>
    %35 = vector.shape_cast %34 : vector<1xf32> to vector<1x1xf32>
    %36 = vector.shape_cast %35 : vector<1x1xf32> to vector<1x1x1xf32>
    %37 = arith.addf %33, %36 : vector<1x1x1xf32>
    %c0_14 = arith.constant 0 : index
    %c0_15 = arith.constant 0 : index
    %c0_16 = arith.constant 0 : index
    %38 = vector.load %arg4[%c0_14, %c0_15, %c0_16] : memref<1x1x1xf32, #tpu.memory_space<vmem>>, vector<1x1x1xf32>
    tpu.vector_store %arg4[%c0_14, %c0_15, %c0_16], %37 {strides = array<i32>} : memref<1x1x1xf32, #tpu.memory_space<vmem>>, vector<1x1x1xf32>,
    %c0_17 = arith.constant 0 : index
    %c0_18 = arith.constant 0 : index
    %c0_19 = arith.constant 0 : index
    %39 = vector.load %arg5[%c0_17, %c0_18, %c0_19] : memref<1x1x1xf32, #tpu.memory_space<vmem>>, vector<1x1x1xf32>
    %cst_20 = arith.constant dense<0.000000e+00> : vector<1xf32>
    %40 = vector.multi_reduction <add>, %25, %cst_20 [0] : vector<16x1xf32> to vector<1xf32>
    %41 = vector.shape_cast %40 : vector<1xf32> to vector<1x1xf32>
    %42 = vector.shape_cast %41 : vector<1x1xf32> to vector<1x1x1xf32>
    %43 = arith.addf %39, %42 : vector<1x1x1xf32>
    %c0_21 = arith.constant 0 : index
    %c0_22 = arith.constant 0 : index
    %c0_23 = arith.constant 0 : index
    %44 = vector.load %arg5[%c0_21, %c0_22, %c0_23] : memref<1x1x1xf32, #tpu.memory_space<vmem>>, vector<1x1x1xf32>
    tpu.vector_store %arg5[%c0_21, %c0_22, %c0_23], %43 {strides = array<i32>} : memref<1x1x1xf32, #tpu.memory_space<vmem>>, vector<1x1x1xf32>,
    return
  }
  func.func @transform_0(%arg0: i32, %arg1: i32) -> (i32, i32) {
    %c1_i32 = arith.constant 1 : i32
    %0 = arith.muli %arg0, %c1_i32 : i32
    %1 = arith.addi %0, %arg1 : i32
    %c0_i32 = arith.constant 0 : i32
    %c0_i32_0 = arith.constant 0 : i32
    return %1, %c0_i32 : i32, i32
  }
  func.func @transform_1(%arg0: i32, %arg1: i32) -> (i32, i32) {
    %c1_i32 = arith.constant 1 : i32
    %0 = arith.muli %arg0, %c1_i32 : i32
    %1 = arith.addi %0, %arg1 : i32
    %c0_i32 = arith.constant 0 : i32
    %c0_i32_0 = arith.constant 0 : i32
    return %1, %c0_i32 : i32, i32
  }
  func.func @transform_2(%arg0: i32, %arg1: i32) -> (i32, i32, i32) {
    %c0_i32 = arith.constant 0 : i32
    %c0_i32_0 = arith.constant 0 : i32
    %c0_i32_1 = arith.constant 0 : i32
    return %arg0, %c0_i32, %c0_i32_0 : i32, i32, i32
  }
  func.func @transform_3(%arg0: i32, %arg1: i32) -> (i32, i32, i32) {
    %c0_i32 = arith.constant 0 : i32
    %c0_i32_0 = arith.constant 0 : i32
    %c0_i32_1 = arith.constant 0 : i32
    return %arg0, %c0_i32, %c0_i32_0 : i32, i32, i32
  }
}

</mosaic_0001>

<llo_original>
// kernel: tpu_custom_call.1
$region0: #{tpu_custom_call.1}
  #allocation0 [shape = 'u32[]', space=smem, size = 0x4, offset = 0x4, fixed_abs, tag = 'smem constant byte address 0x4 - core index']
  #allocation1 [shape = 'u32[144,128]{1,0:T(1,128)}', space=vmem, size = 0x12000, scoped, tag = 'internal scratch']
  %s0 = inlined_call_operand.hbm [shape: f32[16,128], index: 0, kind: input, shape index: {}]
  %s1 = inlined_call_operand.hbm [shape: f32[16,128], index: 1, kind: input, shape index: {}]
  %s2 = inlined_call_operand.hbm [shape: f32[1,1,1], index: 2, kind: output, shape index: {0}]
  %s3 = inlined_call_operand.hbm [shape: f32[1,1,1], index: 3, kind: output, shape index: {1}]
  %4 = xla_tuple %s2, %s3
  %s5 = sld [smem:[#allocation0]]
  $region38: #{tpu_custom_call.1} parent=0
    _
  %s7 = ssub.s32 1, %s5
  %s8 = scalar_select 0, %s7, %s5
  $region1: #{tpu_custom_call.1} parent=0
    #allocation2 [shape = 'u8[8192]{0}', space=vmem, size = 0x2000, scoped, tag = 'input window, operand 0, single buffered']
    #allocation3 [shape = 's32[1]{0}', space=sflag, size = 0x4, scoped, tag = 'scoped memory for tpu_custom_call.1']
    #allocation4 [shape = 's32[1]{0}', space=sflag, size = 0x4, scoped, tag = 'scoped memory for tpu_custom_call.1']
    #allocation5 [shape = 'u8[8192]{0}', space=vmem, size = 0x2000, scoped, tag = 'input window, operand 1, single buffered']
    #allocation6 [shape = 's32[1]{0}', space=sflag, size = 0x4, scoped, tag = 'scoped memory for tpu_custom_call.1']
    #allocation7 [shape = 'u8[512]{0}', space=vmem, size = 0x400, scoped, tag = 'output window, operand 0, single buffered']
    #allocation8 [shape = 'u8[512]{0}', space=vmem, size = 0x400, scoped, tag = 'output window, operand 1, single buffered']
    #allocation9 [shape = 's32[1]{0}', space=sflag, size = 0x4, scoped, tag = 'scoped memory for tpu_custom_call.1']
    %9 = vsyncpa [#allocation3], 0
    %10 = vsyncpa [#allocation6], 0
    %11 = vsyncpa [#allocation4], 0
    %12 = vsyncpa [#allocation9], 0
    // Predicated region
    $region2: #{tpu_custom_call.1} parent=1 // pred_check
      _
    $region3: #{tpu_custom_call.1} parent=1 // pred_check_branch
      %14 = sbr.rel (0) target = $region5
    $region4: #{tpu_custom_call.1} parent=1 // pred_region
      %s15 = sadd.s32 0, 0
      %s16 = smul.u32 2, %s15
      %s18 = ssub.s32 256, 256
      %19 = vsyncadd [#allocation3], %s18
      %s20 = smul.addr %s16, 128
      %s21 = scalar_lea.hbm %s0, %s20
      %s22 = sshll.u32 [#allocation2], 4
      %s23 = int_to_ptr.vmem [resolvable:$true] %s22
      %28 = dma.hbm_to_vmem [thread:$0]  %s21, 256, %s23, [#allocation3], 128, 128, 8
    $region5: #{tpu_custom_call.1} parent=1 // pred_fallthru
      _
    // Predicated region
    $region6: #{tpu_custom_call.1} parent=1 // pred_check
      _
    $region7: #{tpu_custom_call.1} parent=1 // pred_check_branch
      %30 = sbr.rel (0) target = $region9
    $region8: #{tpu_custom_call.1} parent=1 // pred_region
      %s31 = sadd.s32 0, 0
      %s32 = smul.u32 2, %s31
      %s34 = ssub.s32 256, 256
      %35 = vsyncadd [#allocation6], %s34
      %s36 = smul.addr %s32, 128
      %s37 = scalar_lea.hbm %s1, %s36
      %s38 = sshll.u32 [#allocation5], 4
      %s39 = int_to_ptr.vmem [resolvable:$true] %s38
      %44 = dma.hbm_to_vmem [thread:$0]  %s37, 256, %s39, [#allocation6], 128, 128, 8
    $region9: #{tpu_custom_call.1} parent=1 // pred_fallthru
      _
    // Predicated region
    $region10: #{tpu_custom_call.1} parent=1 // pred_check
      _
    $region11: #{tpu_custom_call.1} parent=1 // pred_check_branch
      %46 = sbr.rel (0) target = $region13
    $region12: #{tpu_custom_call.1} parent=1 // pred_region
      %47 = dma.done [#allocation3], 256
    $region13: #{tpu_custom_call.1} parent=1 // pred_fallthru
      _
    // Predicated region
    $region14: #{tpu_custom_call.1} parent=1 // pred_check
      _
    $region15: #{tpu_custom_call.1} parent=1 // pred_check_branch
      %49 = sbr.rel (0) target = $region17
    $region16: #{tpu_custom_call.1} parent=1 // pred_region
      %50 = dma.done [#allocation6], 256
    $region17: #{tpu_custom_call.1} parent=1 // pred_fallthru
      _
    %s51 = sadd.s32 0, 0
    %s52 = smul.u32 2, %s51
    %s53 = sadd.s32 0, 0
    %s54 = smul.u32 2, %s53
    %p55 = scmp.eq.s32.totalorder 0, 0
    // Predicated region
    $region18: #{tpu_custom_call.1} parent=1 // pred_check
      %p56 = pneg %p55
    $region19: #{tpu_custom_call.1} parent=1 // pred_check_branch
      %58 = sbr.rel (%p56) target = $region21
    $region20: #{tpu_custom_call.1} parent=1 // pred_region
      %vm59 = vcmask 0
      %60 = vst.msk [vmem:[#allocation7] sm:$0x1] %vm59, 0.0
      %61 = vst.msk [vmem:[#allocation8] sm:$0x1] %vm59, 0.0
    $region21: #{tpu_custom_call.1} parent=1 // pred_fallthru
      _
    %v62 = vld [vmem:[#allocation2] sm:$0xff]
    %v63 = vld [vmem:[#allocation2 + $0x8] sm:$0xff]
    %v64 = vld [vmem:[#allocation5] sm:$0xff]
    %v65 = vld [vmem:[#allocation5 + $0x8] sm:$0xff]
    %66 = vmax.xlane.f32.xlu0 %v62
    %v67 = vpop.xlane.xlu0 %66
    %68 = vmax.xlane.f32.xlu0 %v63
    %v69 = vpop.xlane.xlu0 %68
    %v70 = vsub.f32 %v62, %v67
    %v71 = vsub.f32 %v63, %v69
    %v72 = vmul.f32 %v70, 1.442695
    %v73 = vpow.pop %v72
    %v74 = vmul.f32 %v71, 1.442695
    %v75 = vpow.pop %v74
    %76 = vadd.xlane.f32.xlu0 %v73
    %v77 = vpop.xlane.xlu0 %76
    %78 = vadd.xlane.f32.xlu0 %v75
    %v79 = vpop.xlane.xlu0 %78
    %v80 = vlog2.pop %v77
    %v81 = vmul.f32 %v80, 0.6931472
    %v82 = vlog2.pop %v79
    %v83 = vmul.f32 %v82, 0.6931472
    %v84 = vmul.f32 %v64, 2.5
    %v85 = vmul.f32 %v65, 2.5
    %86 = vmax.xlane.f32.xlu0 %v84
    %v87 = vpop.xlane.xlu0 %86
    %88 = vmax.xlane.f32.xlu0 %v85
    %v89 = vpop.xlane.xlu0 %88
    %v90 = vsub.f32 %v84, %v87
    %v91 = vsub.f32 %v85, %v89
    %v92 = vmul.f32 %v90, 1.442695
    %v93 = vpow.pop %v92
    %v94 = vmul.f32 %v91, 1.442695
    %v95 = vpow.pop %v94
    %96 = vadd.xlane.f32.xlu0 %v93
    %v97 = vpop.xlane.xlu0 %96
    %98 = vadd.xlane.f32.xlu0 %v95
    %v99 = vpop.xlane.xlu0 %98
    %vm100 = vcmp.lt.f32.partialorder %v97, 1.6666666
    %vm101 = vcmp.lt.f32.partialorder %v99, 1.6666666
    %v102 = vsel %vm100, 1, 0
    %v103 = vsel %vm101, 1, 0
    %v104 = vcvt.s32.f32 %v102
    %v105 = vcvt.s32.f32 %v103
    %v106 = vmul.f32 %v93, %v70
    %v107 = vmul.f32 %v95, %v71
    %108 = vadd.xlane.f32.xlu0 %v106
    %v109 = vpop.xlane.xlu0 %108
    %110 = vadd.xlane.f32.xlu0 %v107
    %v111 = vpop.xlane.xlu0 %110
    %v112 = vrcp.pop %v97
    %v113 = vrcp.pop %v99
    %v114 = vmul.f32 %v109, %v112
    %v115 = vmul.f32 %v111, %v113
    %v116 = vsub.f32 %v81, %v114
    %v117 = vsub.f32 %v83, %v115
    %v118 = vmul.f32 %v116, %v104
    %v119 = vmul.f32 %v117, %v105
    %v120 = vld [vmem:[#allocation7] sm:$0x1]
    %v121 = vadd.f32 %v118, %v119
    %v122 = vrot.slane %v121, 4
    %v123 = vadd.f32 %v121, %v122
    %v124 = vrot.slane %v123, 2
    %v125 = vadd.f32 %v123, %v124
    %v126 = vrot.slane %v125, 1
    %v127 = vadd.f32 %v125, %v126
    %v128 = vadd.f32 %v120, %v127
    %vm129 = vcmask 0
    %130 = vst.msk [vmem:[#allocation7] sm:$0x1] %vm129, %v128
    %v131 = vld [vmem:[#allocation8] sm:$0x1]
    %v132 = vadd.f32 %v104, %v105
    %v133 = vrot.slane %v132, 4
    %v134 = vadd.f32 %v132, %v133
    %v135 = vrot.slane %v134, 2
    %v136 = vadd.f32 %v134, %v135
    %v137 = vrot.slane %v136, 1
    %v138 = vadd.f32 %v136, %v137
    %v139 = vadd.f32 %v131, %v138
    %140 = vst.msk [vmem:[#allocation8] sm:$0x1] %vm129, %v139
    // Predicated region
    $region22: #{tpu_custom_call.1} parent=1 // pred_check
      _
    $region23: #{tpu_custom_call.1} parent=1 // pred_check_branch
      %142 = sbr.rel (0) target = $region25
    $region24: #{tpu_custom_call.1} parent=1 // pred_region
      %s144 = ssub.s32 16, 16
      %145 = vsyncadd [#allocation4], %s144
      %s147 = sshll.u32 [#allocation7], 4
      %s148 = int_to_ptr.vmem [resolvable:$true] %s147
      %150 = dma.vmem_to_hbm [thread:$0]  %s148, 16, %s2, [#allocation4]
    $region25: #{tpu_custom_call.1} parent=1 // pred_fallthru
      _
    // Predicated region
    $region26: #{tpu_custom_call.1} parent=1 // pred_check
      _
    $region27: #{tpu_custom_call.1} parent=1 // pred_check_branch
      %152 = sbr.rel (0) target = $region29
    $region28: #{tpu_custom_call.1} parent=1 // pred_region
      %s154 = ssub.s32 16, 16
      %155 = vsyncadd [#allocation9], %s154
      %s157 = sshll.u32 [#allocation8], 4
      %s158 = int_to_ptr.vmem [resolvable:$true] %s157
      %160 = dma.vmem_to_hbm [thread:$0]  %s158, 16, %s3, [#allocation9]
    $region29: #{tpu_custom_call.1} parent=1 // pred_fallthru
      _
    // Predicated region
    $region30: #{tpu_custom_call.1} parent=1 // pred_check
      _
    $region31: #{tpu_custom_call.1} parent=1 // pred_check_branch
      %162 = sbr.rel (0) target = $region33
    $region32: #{tpu_custom_call.1} parent=1 // pred_region
      %163 = dma.done [#allocation4], 16
    $region33: #{tpu_custom_call.1} parent=1 // pred_fallthru
      _
    // Predicated region
    $region34: #{tpu_custom_call.1} parent=1 // pred_check
      _
    $region35: #{tpu_custom_call.1} parent=1 // pred_check_branch
      %165 = sbr.rel (0) target = $region37
    $region36: #{tpu_custom_call.1} parent=1 // pred_region
      %166 = dma.done [#allocation9], 16
    $region37: #{tpu_custom_call.1} parent=1 // pred_fallthru
      _
    %167 = vsyncpa [#allocation3], 1
    %168 = vsyncpa [#allocation6], 1
    %169 = vsyncpa [#allocation4], 1
    %170 = vsyncpa [#allocation9], 1

</llo_original>
